<compile_context>
chip_gen: v5e
topology: v5e:2x2
jax: 0.10.0
libtpu: 0.0.40
codegen_flags: <defaults>
</compile_context>

<pallas_src>
import functools

import jax
import jax.numpy as jnp
from jax.experimental import pallas as pl
from jax.experimental.pallas import tpu as pltpu


def _round_up(n: int, m: int) -> int:
    return ((n + m - 1) // m) * m


def _pick_lane_tile(n: int, max_tile: int) -> int:
    """Largest multiple of 128 <= max_tile that divides n (n % 128 == 0)."""
    t = (min(max_tile, n) // 128) * 128
    while t > 128 and n % t != 0:
        t -= 128
    return max(t, 128)


def _uwl_kernel(ph_ref, p_ref, xh_ref, x_ref, w_ref, b_ref,
                out_ref, acc_pix, acc_perc, *, B, n_pix, n_img, spp):
    c = pl.program_id(0)          # parallel slice (megacore on v7x)
    k = pl.program_id(1)          # lane-tile step inside the slice
    kg = c * spp + k              # global lane-tile index

    @pl.when(k == 0)
    def _init():
        acc_pix[...] = jnp.zeros_like(acc_pix)
        acc_perc[...] = jnp.zeros_like(acc_perc)

    # ----- pixel (PatchWise L1) branch: accumulate |ph - p| -----------------
    @pl.when(kg < n_pix)
    def _pixel():
        d = ph_ref[...].astype(jnp.float32) - p_ref[...].astype(jnp.float32)
        acc_pix[...] += jnp.abs(d)

    # ----- perceptual branch: relu(1x1-conv) feature MSE, contract over Cin -
    @pl.when(kg < n_img)
    def _perceptual():
        w = w_ref[...]            # (Cout, Cin)  f32
        bias = b_ref[...]         # (Cout, 1)    f32
        for bi in range(B):       # static unroll, O(B) tiny matmuls
            fh = jnp.dot(w, xh_ref[bi].astype(jnp.float32),
                         preferred_element_type=jnp.float32)      # (Cout, tP)
            fx = jnp.dot(w, x_ref[bi].astype(jnp.float32),
                         preferred_element_type=jnp.float32)
            fh = jnp.maximum(fh + bias, 0.0)
            fx = jnp.maximum(fx + bias, 0.0)
            d = fh - fx
            acc_perc[bi] += d * d

    # ----- epilogue: reduce once, lane-dense (8,128) unmasked store ---------
    @pl.when(k == spp - 1)
    def _finalize():
        s_pix = jnp.sum(acc_pix[...])
        s_perc = jnp.sum(acc_perc[...])
        rows = jax.lax.broadcasted_iota(jnp.int32, (8, 128), 0)
        vals = jnp.where(rows == 0, s_pix,
                         jnp.where(rows == 1, s_perc, 0.0)).astype(jnp.float32)
        out_ref[...] = vals[None]


def uncertainty_weighted_loss(x_hat, x, patches_hat, patches,
                              log_var1, log_var2, conv_w, conv_b,
                              *, max_lane_tile=512, n_split=2):
    """Fused forward pass. Returns (uwl, pixel_loss_mean, perceptual_loss_mean).

    Per-sample means equal the global means (every sample has the same element
    count), so:  uwl = exp(-lv1)*pix_mean + lv1 + exp(-lv2)*perc_mean + lv2.
    """
    B, Cin, H, W = x_hat.shape
    P = H * W
    Cout = conv_w.shape[1]
    F = int(patches_hat.size) // B

    # ---- images: free reshape to (B, Cin, P); zero-pad spatial axis to x128.
    #      Padded columns are identical in x_hat/x, so relu(W*0+b) cancels in
    #      the feature diff -> loss-neutral; divisors stay unpadded. ----------
    xh3 = x_hat.reshape(B, Cin, P)
    x3 = x.reshape(B, Cin, P)
    Ppad = _round_up(P, 128)
    if Ppad != P:
        pad = ((0, 0), (0, 0), (0, Ppad - P))
        xh3 = jnp.pad(xh3, pad)
        x3 = jnp.pad(x3, pad)

    # ---- patches: flatten + zero-pad to x(8*128), view as sublane-dense slab.
    n_pix_el = B * F
    n_pix_pad = _round_up(n_pix_el, 8 * 128)
    ph_flat = patches_hat.reshape(-1)
    p_flat = patches.reshape(-1)
    if n_pix_pad != n_pix_el:
        ph_flat = jnp.pad(ph_flat, (0, n_pix_pad - n_pix_el))
        p_flat = jnp.pad(p_flat, (0, n_pix_pad - n_pix_el))
    Lpix = n_pix_pad // 8
    ph2 = ph_flat.reshape(8, Lpix)
    p2 = p_flat.reshape(8, Lpix)

    # ---- tiny per-channel weight: contraction over Cin only (O(B) work) ----
    w_t = jnp.asarray(conv_w, jnp.float32).T            # (Cout, Cin)
    b_col = jnp.asarray(conv_b, jnp.float32).reshape(Cout, 1)

    # ---- lane tiling of the two reductions ---------------------------------
    tP = _pick_lane_tile(Ppad, max_lane_tile)
    tPix = _pick_lane_tile(Lpix, max_lane_tile)
    n_img = Ppad // tP
    n_pix = Lpix // tPix
    nk = max(n_img, n_pix)
    n_split = max(1, min(n_split, nk))                  # megacore split (v7x)
    spp = pl.cdiv(nk, n_split)                          # steps per slice

    kernel = functools.partial(_uwl_kernel, B=B, n_pix=n_pix,
                               n_img=n_img, spp=spp)

    def pix_map(c, k):
        return (0, jnp.minimum(c * spp + k, n_pix - 1))

    def img_map(c, k):
        return (0, 0, jnp.minimum(c * spp + k, n_img - 1))

    # VMEM budget: double-buffered inputs + accumulators (+ slack); keep the
    # scoped limit comfortably under v7x's 64 MiB physical VMEM.
    isz = max(xh3.dtype.itemsize, ph2.dtype.itemsize)
    vmem_need = (2 * 2 * 8 * tPix * isz                 # ph/p double buffers
                 + 2 * 2 * B * Cin * tP * isz           # xh/x double buffers
                 + (8 * tPix + B * Cout * tP) * 4       # accumulators
                 + 2 * 8 * 128 * 4 + 64 * 1024)         # out blocks + w/b/slack
    vmem_limit = int(min(max(2 * vmem_need, 32 * 1024 * 1024),
                         48 * 1024 * 1024))

    in_bytes = sum(int(a.size) * a.dtype.itemsize for a in (ph2, p2, xh3, x3))
    flops = (4 * B * Cout * Cin * P      # 2 dots per sample (unpadded)
             + 3 * B * F                 # pixel L1 + accumulate
             + 6 * B * Cout * P)         # bias/relu/diff/square/accumulate

    out = pl.pallas_call(
        kernel,
        grid=(n_split, spp),
        in_specs=[
            pl.BlockSpec((8, tPix), pix_map),
            pl.BlockSpec((8, tPix), pix_map),
            pl.BlockSpec((B, Cin, tP), img_map),
            pl.BlockSpec((B, Cin, tP), img_map),
            pl.BlockSpec((Cout, Cin), lambda c, k: (0, 0)),
            pl.BlockSpec((Cout, 1), lambda c, k: (0, 0)),
        ],
        out_specs=pl.BlockSpec((1, 8, 128), lambda c, k: (c, 0, 0)),
        out_shape=jax.ShapeDtypeStruct((n_split, 8, 128), jnp.float32),
        scratch_shapes=[pltpu.VMEM((8, tPix), jnp.float32),
                        pltpu.VMEM((B, Cout, tP), jnp.float32)],
        compiler_params=pltpu.CompilerParams(
            dimension_semantics=("parallel", "arbitrary"),
            vmem_limit_bytes=vmem_limit),
        cost_estimate=pl.CostEstimate(flops=flops, transcendentals=0,
                                      bytes_accessed=in_bytes + n_split * 8 * 128 * 4),
    )(ph2, p2, xh3, x3, w_t, b_col)

    # ---- uncertainty weighting: scalar math, plain JAX (divisors unpadded) --
    pix_mean = jnp.sum(out[:, 0, 0]) / (B * F)
    perc_mean = jnp.sum(out[:, 1, 0]) / (B * Cout * P)
    lv1 = jnp.asarray(log_var1, jnp.float32)
    lv2 = jnp.asarray(log_var2, jnp.float32)
    uwl = jnp.exp(-lv1) * pix_mean + lv1 + jnp.exp(-lv2) * perc_mean + lv2
    return uwl, pix_mean, perc_mean


# ---------------------------------------------------------------------------
# Pure-JAX reference mirroring the module's per-sample formulation exactly.
# ---------------------------------------------------------------------------
def _reference(x_hat, x, patches_hat, patches, lv1, lv2, conv_w, conv_b):
    B = patches_hat.shape[0]
    pix = jnp.mean(jnp.abs(patches_hat - patches).reshape(B, -1),
                   axis=-1, keepdims=True)

    def feat(img):
        nhwc = jnp.transpose(img, (0, 2, 3, 1)).reshape(B, -1, img.shape[1])
        return jnp.maximum(nhwc @ conv_w + conv_b, 0.0)

    d = feat(x_hat) - feat(x)
    perc = jnp.mean((d * d).reshape(B, -1), axis=-1, keepdims=True)

    p1, p2 = jnp.exp(-lv1), jnp.exp(-lv2)
    loss = jnp.sum(p1 * pix + lv1, axis=-1) + jnp.sum(p2 * perc + lv2, axis=-1)
    return jnp.mean(loss), jnp.mean(pix), jnp.mean(perc)


if __name__ == "__main__":
    key = jax.random.PRNGKey(0)
    k1, k2, k3, k4, k5, k6 = jax.random.split(key, 6)

    # deterministic synthetic "SqueezePerceptual" 1x1-conv params (stand-in)
    Cin, Cout = 4, 8
    conv_w = 0.1 * jax.random.normal(k5, (Cin, Cout), dtype=jnp.float32)
    conv_b = 0.01 * jax.random.normal(k6, (Cout,), dtype=jnp.float32)

    # nn.Parameter initial values from the module's __init__
    log_var1 = jnp.float32(-1.0)
    log_var2 = jnp.float32(-6.0)

    def run_case(kx, kp, B, H, W, NP, PH, PW, **kw):
        ka, kb = jax.random.split(kx)
        kc, kd = jax.random.split(kp)
        x = jax.random.normal(ka, (B, Cin, H, W), dtype=jnp.float32)
        x_hat = x + 0.1 * jax.random.normal(kb, (B, Cin, H, W), jnp.float32)
        patches = jax.random.normal(kc, (B, NP, Cin, PH, PW), jnp.float32)
        patches_hat = patches + 0.1 * jax.random.normal(
            kd, (B, NP, Cin, PH, PW), jnp.float32)

        got = uncertainty_weighted_loss(
            x_hat, x, patches_hat, patches, log_var1, log_var2,
            conv_w, conv_b, **kw)
        jax.block_until_ready(got)
        want = _reference(x_hat, x, patches_hat, patches,
                          log_var1, log_var2, conv_w, conv_b)
        for g, w_ in zip(got, want):
            assert jnp.allclose(g, w_, rtol=1e-5, atol=1e-5), (g, w_)

    # multi-step lane-tile reduction on a single slice (grid (1, 2))
    run_case(k1, k2, B=2, H=16, W=16, NP=4, PH=8, PW=8,
             max_lane_tile=128, n_split=1)
    # reduction split across two "parallel" slices (v7x megacore path)
    run_case(k1, k2, B=2, H=16, W=16, NP=4, PH=8, PW=8,
             max_lane_tile=128, n_split=2)
    # non-128-divisible spatial / patch extents -> zero-padded, loss-neutral
    run_case(k3, k4, B=2, H=10, W=12, NP=3, PH=5, PW=5)

    print("KERNEL_OK")
</pallas_src>

<mosaic_0001>
module attributes {stable_mosaic.version = 11 : i64} {
  func.func @_uwl_kernel(%arg0: i32, %arg1: i32, %arg2: memref<8x128xf32, #tpu.memory_space<vmem>>, %arg3: memref<8x128xf32, #tpu.memory_space<vmem>>, %arg4: memref<2x4x128xf32, #tpu.memory_space<vmem>>, %arg5: memref<2x4x128xf32, #tpu.memory_space<vmem>>, %arg6: memref<8x4xf32, #tpu.memory_space<vmem>>, %arg7: memref<8x1xf32, #tpu.memory_space<vmem>>, %arg8: memref<1x8x128xf32, #tpu.memory_space<vmem>>, %arg9: memref<8x128xf32, #tpu.memory_space<vmem>>, %arg10: memref<2x8x128xf32, #tpu.memory_space<vmem>>) attributes {dimension_semantics = [#tpu.dimension_semantics<parallel>, #tpu.dimension_semantics<arbitrary>], iteration_bounds = array<i64: 1, 2>, scalar_prefetch = 0 : i64, scratch_operands = 2 : i64, tpu.core_type = #tpu.core_type<tc>, window_params = [{transform_indices = @transform_0, window_bounds = array<i64: 8, 128>}, {transform_indices = @transform_1, window_bounds = array<i64: 8, 128>}, {transform_indices = @transform_2, window_bounds = array<i64: 2, 4, 128>}, {transform_indices = @transform_3, window_bounds = array<i64: 2, 4, 128>}, {pipeline_mode = #tpu.pipeline_mode<synchronous>, transform_indices = @transform_4, window_bounds = array<i64: 8, 4>}, {pipeline_mode = #tpu.pipeline_mode<synchronous>, transform_indices = @transform_5, window_bounds = array<i64: 8, 1>}, {transform_indices = @transform_6, window_bounds = array<i64: 1, 8, 128>}]} {
    %c2_i32 = arith.constant 2 : i32
    %0 = arith.muli %arg0, %c2_i32 : i32
    %1 = arith.addi %0, %arg1 : i32
    %c0_i32 = arith.constant 0 : i32
    %2 = arith.cmpi eq, %arg1, %c0_i32 : i32
    %3 = arith.extui %2 : i1 to i32
    %c0_i32_0 = arith.constant 0 : i32
    %4 = arith.cmpi ne, %3, %c0_i32_0 : i32
    scf.if %4 {
      %cst = arith.constant 0.000000e+00 : f32
      %14 = vector.broadcast %cst : f32 to vector<8x128xf32>
      %c0 = arith.constant 0 : index
      %c0_6 = arith.constant 0 : index
      %15 = vector.load %arg9[%c0, %c0_6] : memref<8x128xf32, #tpu.memory_space<vmem>>, vector<8x128xf32>
      tpu.vector_store %arg9[%c0, %c0_6], %14 {strides = array<i32>} : memref<8x128xf32, #tpu.memory_space<vmem>>, vector<8x128xf32>,
      %cst_7 = arith.constant 0.000000e+00 : f32
      %16 = vector.broadcast %cst_7 : f32 to vector<2x8x128xf32>
      %c0_8 = arith.constant 0 : index
      %c0_9 = arith.constant 0 : index
      %c0_10 = arith.constant 0 : index
      %17 = vector.load %arg10[%c0_8, %c0_9, %c0_10] : memref<2x8x128xf32, #tpu.memory_space<vmem>>, vector<2x8x128xf32>
      tpu.vector_store %arg10[%c0_8, %c0_9, %c0_10], %16 {strides = array<i32>} : memref<2x8x128xf32, #tpu.memory_space<vmem>>, vector<2x8x128xf32>,
    } else {
    }
    %c2_i32_1 = arith.constant 2 : i32
    %5 = arith.cmpi slt, %1, %c2_i32_1 : i32
    %6 = arith.extui %5 : i1 to i32
    %c0_i32_2 = arith.constant 0 : i32
    %7 = arith.cmpi ne, %6, %c0_i32_2 : i32
    scf.if %7 {
      %c0 = arith.constant 0 : index
      %c0_6 = arith.constant 0 : index
      %14 = vector.load %arg2[%c0, %c0_6] : memref<8x128xf32, #tpu.memory_space<vmem>>, vector<8x128xf32>
      %c0_7 = arith.constant 0 : index
      %c0_8 = arith.constant 0 : index
      %15 = vector.load %arg3[%c0_7, %c0_8] : memref<8x128xf32, #tpu.memory_space<vmem>>, vector<8x128xf32>
      %16 = arith.subf %14, %15 : vector<8x128xf32>
      %c0_9 = arith.constant 0 : index
      %c0_10 = arith.constant 0 : index
      %17 = vector.load %arg9[%c0_9, %c0_10] : memref<8x128xf32, #tpu.memory_space<vmem>>, vector<8x128xf32>
      %18 = math.absf %16 : vector<8x128xf32>
      %19 = arith.addf %17, %18 : vector<8x128xf32>
      %c0_11 = arith.constant 0 : index
      %c0_12 = arith.constant 0 : index
      %20 = vector.load %arg9[%c0_11, %c0_12] : memref<8x128xf32, #tpu.memory_space<vmem>>, vector<8x128xf32>
      tpu.vector_store %arg9[%c0_11, %c0_12], %19 {strides = array<i32>} : memref<8x128xf32, #tpu.memory_space<vmem>>, vector<8x128xf32>,
    } else {
    }
    %c2_i32_3 = arith.constant 2 : i32
    %8 = arith.cmpi slt, %1, %c2_i32_3 : i32
    %9 = arith.extui %8 : i1 to i32
    %c0_i32_4 = arith.constant 0 : i32
    %10 = arith.cmpi ne, %9, %c0_i32_4 : i32
    scf.if %10 {
      %c0 = arith.constant 0 : index
      %c0_6 = arith.constant 0 : index
      %14 = vector.load %arg6[%c0, %c0_6] : memref<8x4xf32, #tpu.memory_space<vmem>>, vector<8x4xf32>
      %c0_7 = arith.constant 0 : index
      %c0_8 = arith.constant 0 : index
      %15 = vector.load %arg7[%c0_7, %c0_8] : memref<8x1xf32, #tpu.memory_space<vmem>>, vector<8x1xf32>
      %c0_9 = arith.constant 0 : index
      %c0_10 = arith.constant 0 : index
      %c0_11 = arith.constant 0 : index
      %16 = vector.load %arg4[%c0_9, %c0_10, %c0_11] : memref<2x4x128xf32, #tpu.memory_space<vmem>>, vector<1x4x128xf32>
      %17 = vector.shape_cast %16 : vector<1x4x128xf32> to vector<4x128xf32>
      %cst = arith.constant dense<0.000000e+00> : vector<8x128xf32>
      %18 = tpu.matmul %14, %17, %cst {dimension_numbers = #tpu.dot_dimension_numbers<[1], [0], [0], [1], [0, 0, 1, 1], [], []>} : vector<8x4xf32>, vector<4x128xf32>, vector<8x128xf32> -> vector<8x128xf32>
      %c0_12 = arith.constant 0 : index
      %c0_13 = arith.constant 0 : index
      %c0_14 = arith.constant 0 : index
      %19 = vector.load %arg5[%c0_12, %c0_13, %c0_14] : memref<2x4x128xf32, #tpu.memory_space<vmem>>, vector<1x4x128xf32>
      %20 = vector.shape_cast %19 : vector<1x4x128xf32> to vector<4x128xf32>
      %cst_15 = arith.constant dense<0.000000e+00> : vector<8x128xf32>
      %21 = tpu.matmul %14, %20, %cst_15 {dimension_numbers = #tpu.dot_dimension_numbers<[1], [0], [0], [1], [0, 0, 1, 1], [], []>} : vector<8x4xf32>, vector<4x128xf32>, vector<8x128xf32> -> vector<8x128xf32>
      %22 = vector.broadcast %15 : vector<8x1xf32> to vector<8x128xf32>
      %23 = arith.addf %18, %22 : vector<8x128xf32>
      %cst_16 = arith.constant 0.000000e+00 : f32
      %24 = vector.broadcast %cst_16 : f32 to vector<8x128xf32>
      %25 = arith.maximumf %23, %24 : vector<8x128xf32>
      %26 = vector.broadcast %15 : vector<8x1xf32> to vector<8x128xf32>
      %27 = arith.addf %21, %26 : vector<8x128xf32>
      %cst_17 = arith.constant 0.000000e+00 : f32
      %28 = vector.broadcast %cst_17 : f32 to vector<8x128xf32>
      %29 = arith.maximumf %27, %28 : vector<8x128xf32>
      %30 = arith.subf %25, %29 : vector<8x128xf32>
      %c0_18 = arith.constant 0 : index
      %c0_19 = arith.constant 0 : index
      %c0_20 = arith.constant 0 : index
      %31 = vector.load %arg10[%c0_18, %c0_19, %c0_20] : memref<2x8x128xf32, #tpu.memory_space<vmem>>, vector<1x8x128xf32>
      %32 = vector.shape_cast %31 : vector<1x8x128xf32> to vector<8x128xf32>
      %33 = arith.mulf %30, %30 : vector<8x128xf32>
      %34 = arith.addf %32, %33 : vector<8x128xf32>
      %c0_21 = arith.constant 0 : index
      %c0_22 = arith.constant 0 : index
      %c0_23 = arith.constant 0 : index
      %35 = vector.load %arg10[%c0_21, %c0_22, %c0_23] : memref<2x8x128xf32, #tpu.memory_space<vmem>>, vector<1x8x128xf32>
      %36 = vector.shape_cast %35 : vector<1x8x128xf32> to vector<8x128xf32>
      %37 = vector.shape_cast %34 : vector<8x128xf32> to vector<1x8x128xf32>
      tpu.vector_store %arg10[%c0_21, %c0_22, %c0_23], %37 {strides = array<i32>} : memref<2x8x128xf32, #tpu.memory_space<vmem>>, vector<1x8x128xf32>,
      %c1 = arith.constant 1 : index
      %c0_24 = arith.constant 0 : index
      %c0_25 = arith.constant 0 : index
      %38 = vector.load %arg4[%c1, %c0_24, %c0_25] : memref<2x4x128xf32, #tpu.memory_space<vmem>>, vector<1x4x128xf32>
      %39 = vector.shape_cast %38 : vector<1x4x128xf32> to vector<4x128xf32>
      %cst_26 = arith.constant dense<0.000000e+00> : vector<8x128xf32>
      %40 = tpu.matmul %14, %39, %cst_26 {dimension_numbers = #tpu.dot_dimension_numbers<[1], [0], [0], [1], [0, 0, 1, 1], [], []>} : vector<8x4xf32>, vector<4x128xf32>, vector<8x128xf32> -> vector<8x128xf32>
      %c1_27 = arith.constant 1 : index
      %c0_28 = arith.constant 0 : index
      %c0_29 = arith.constant 0 : index
      %41 = vector.load %arg5[%c1_27, %c0_28, %c0_29] : memref<2x4x128xf32, #tpu.memory_space<vmem>>, vector<1x4x128xf32>
      %42 = vector.shape_cast %41 : vector<1x4x128xf32> to vector<4x128xf32>
      %cst_30 = arith.constant dense<0.000000e+00> : vector<8x128xf32>
      %43 = tpu.matmul %14, %42, %cst_30 {dimension_numbers = #tpu.dot_dimension_numbers<[1], [0], [0], [1], [0, 0, 1, 1], [], []>} : vector<8x4xf32>, vector<4x128xf32>, vector<8x128xf32> -> vector<8x128xf32>
      %44 = vector.broadcast %15 : vector<8x1xf32> to vector<8x128xf32>
      %45 = arith.addf %40, %44 : vector<8x128xf32>
      %cst_31 = arith.constant 0.000000e+00 : f32
      %46 = vector.broadcast %cst_31 : f32 to vector<8x128xf32>
      %47 = arith.maximumf %45, %46 : vector<8x128xf32>
      %48 = vector.broadcast %15 : vector<8x1xf32> to vector<8x128xf32>
      %49 = arith.addf %43, %48 : vector<8x128xf32>
      %cst_32 = arith.constant 0.000000e+00 : f32
      %50 = vector.broadcast %cst_32 : f32 to vector<8x128xf32>
      %51 = arith.maximumf %49, %50 : vector<8x128xf32>
      %52 = arith.subf %47, %51 : vector<8x128xf32>
      %c1_33 = arith.constant 1 : index
      %c0_34 = arith.constant 0 : index
      %c0_35 = arith.constant 0 : index
      %53 = vector.load %arg10[%c1_33, %c0_34, %c0_35] : memref<2x8x128xf32, #tpu.memory_space<vmem>>, vector<1x8x128xf32>
      %54 = vector.shape_cast %53 : vector<1x8x128xf32> to vector<8x128xf32>
      %55 = arith.mulf %52, %52 : vector<8x128xf32>
      %56 = arith.addf %54, %55 : vector<8x128xf32>
      %c1_36 = arith.constant 1 : index
      %c0_37 = arith.constant 0 : index
      %c0_38 = arith.constant 0 : index
      %57 = vector.load %arg10[%c1_36, %c0_37, %c0_38] : memref<2x8x128xf32, #tpu.memory_space<vmem>>, vector<1x8x128xf32>
      %58 = vector.shape_cast %57 : vector<1x8x128xf32> to vector<8x128xf32>
      %59 = vector.shape_cast %56 : vector<8x128xf32> to vector<1x8x128xf32>
      tpu.vector_store %arg10[%c1_36, %c0_37, %c0_38], %59 {strides = array<i32>} : memref<2x8x128xf32, #tpu.memory_space<vmem>>, vector<1x8x128xf32>,
    } else {
    }
    %c1_i32 = arith.constant 1 : i32
    %11 = arith.cmpi eq, %arg1, %c1_i32 : i32
    %12 = arith.extui %11 : i1 to i32
    %c0_i32_5 = arith.constant 0 : i32
    %13 = arith.cmpi ne, %12, %c0_i32_5 : i32
    scf.if %13 {
      %c0 = arith.constant 0 : index
      %c0_6 = arith.constant 0 : index
      %14 = vector.load %arg9[%c0, %c0_6] : memref<8x128xf32, #tpu.memory_space<vmem>>, vector<8x128xf32>
      %15 = vector.shape_cast %14 : vector<8x128xf32> to vector<1x8x128xf32>
      %cst = arith.constant dense<0.000000e+00> : vector<1xf32>
      %16 = vector.multi_reduction <add>, %15, %cst [1, 2] : vector<1x8x128xf32> to vector<1xf32>
      %17 = vector.shape_cast %16 : vector<1xf32> to vector<1x1x1xf32>
      %18 = vector.extract %17[0, 0, 0] : f32 from vector<1x1x1xf32>
      %c0_7 = arith.constant 0 : index
      %c0_8 = arith.constant 0 : index
      %c0_9 = arith.constant 0 : index
      %19 = vector.load %arg10[%c0_7, %c0_8, %c0_9] : memref<2x8x128xf32, #tpu.memory_space<vmem>>, vector<2x8x128xf32>
      %20 = vector.shape_cast %19 : vector<2x8x128xf32> to vector<1x2x8x128xf32>
      %cst_10 = arith.constant dense<0.000000e+00> : vector<1xf32>
      %21 = vector.multi_reduction <add>, %20, %cst_10 [1, 2, 3] : vector<1x2x8x128xf32> to vector<1xf32>
      %22 = vector.shape_cast %21 : vector<1xf32> to vector<1x1x1x1xf32>
      %23 = vector.extract %22[0, 0, 0, 0] : f32 from vector<1x1x1x1xf32>
      %24 = tpu.iota {dimensions = array<i32: 0>} : vector<8x128xi32>
      %c0_i32_11 = arith.constant 0 : i32
      %25 = vector.broadcast %c0_i32_11 : i32 to vector<8x128xi32>
      %26 = arith.cmpi eq, %24, %25 : vector<8x128xi32>
      %c1_i32_12 = arith.constant 1 : i32
      %27 = vector.broadcast %c1_i32_12 : i32 to vector<8x128xi32>
      %28 = arith.cmpi eq, %24, %27 : vector<8x128xi32>
      %cst_13 = arith.constant 0.000000e+00 : f32
      %29 = vector.broadcast %23 : f32 to vector<8x128xf32>
      %30 = vector.broadcast %cst_13 : f32 to vector<8x128xf32>
      %31 = arith.select %28, %29, %30 : vector<8x128xi1>, vector<8x128xf32>
      %32 = vector.broadcast %18 : f32 to vector<8x128xf32>
      %33 = arith.select %26, %32, %31 : vector<8x128xi1>, vector<8x128xf32>
      %34 = vector.shape_cast %33 : vector<8x128xf32> to vector<1x8x128xf32>
      %c0_14 = arith.constant 0 : index
      %c0_15 = arith.constant 0 : index
      %c0_16 = arith.constant 0 : index
      %35 = vector.load %arg8[%c0_14, %c0_15, %c0_16] : memref<1x8x128xf32, #tpu.memory_space<vmem>>, vector<1x8x128xf32>
      tpu.vector_store %arg8[%c0_14, %c0_15, %c0_16], %34 {strides = array<i32>} : memref<1x8x128xf32, #tpu.memory_space<vmem>>, vector<1x8x128xf32>,
    } else {
    }
    return
  }
  func.func @transform_0(%arg0: i32, %arg1: i32) -> (i32, i32) {
    %c2_i32 = arith.constant 2 : i32
    %0 = arith.muli %arg0, %c2_i32 : i32
    %1 = arith.addi %0, %arg1 : i32
    %c1_i32 = arith.constant 1 : i32
    %2 = arith.minsi %1, %c1_i32 : i32
    %c0_i32 = arith.constant 0 : i32
    %c0_i32_0 = arith.constant 0 : i32
    return %c0_i32, %2 : i32, i32
  }
  func.func @transform_1(%arg0: i32, %arg1: i32) -> (i32, i32) {
    %c2_i32 = arith.constant 2 : i32
    %0 = arith.muli %arg0, %c2_i32 : i32
    %1 = arith.addi %0, %arg1 : i32
    %c1_i32 = arith.constant 1 : i32
    %2 = arith.minsi %1, %c1_i32 : i32
    %c0_i32 = arith.constant 0 : i32
    %c0_i32_0 = arith.constant 0 : i32
    return %c0_i32, %2 : i32, i32
  }
  func.func @transform_2(%arg0: i32, %arg1: i32) -> (i32, i32, i32) {
    %c2_i32 = arith.constant 2 : i32
    %0 = arith.muli %arg0, %c2_i32 : i32
    %1 = arith.addi %0, %arg1 : i32
    %c1_i32 = arith.constant 1 : i32
    %2 = arith.minsi %1, %c1_i32 : i32
    %c0_i32 = arith.constant 0 : i32
    %c0_i32_0 = arith.constant 0 : i32
    %c0_i32_1 = arith.constant 0 : i32
    return %c0_i32, %c0_i32_0, %2 : i32, i32, i32
  }
  func.func @transform_3(%arg0: i32, %arg1: i32) -> (i32, i32, i32) {
    %c2_i32 = arith.constant 2 : i32
    %0 = arith.muli %arg0, %c2_i32 : i32
    %1 = arith.addi %0, %arg1 : i32
    %c1_i32 = arith.constant 1 : i32
    %2 = arith.minsi %1, %c1_i32 : i32
    %c0_i32 = arith.constant 0 : i32
    %c0_i32_0 = arith.constant 0 : i32
    %c0_i32_1 = arith.constant 0 : i32
    return %c0_i32, %c0_i32_0, %2 : i32, i32, i32
  }
  func.func @transform_4(%arg0: i32, %arg1: i32) -> (i32, i32) {
    %c0_i32 = arith.constant 0 : i32
    %c0_i32_0 = arith.constant 0 : i32
    %c0_i32_1 = arith.constant 0 : i32
    return %c0_i32, %c0_i32_0 : i32, i32
  }
  func.func @transform_5(%arg0: i32, %arg1: i32) -> (i32, i32) {
    %c0_i32 = arith.constant 0 : i32
    %c0_i32_0 = arith.constant 0 : i32
    %c0_i32_1 = arith.constant 0 : i32
    return %c0_i32, %c0_i32_0 : i32, i32
  }
  func.func @transform_6(%arg0: i32, %arg1: i32) -> (i32, i32, i32) {
    %c0_i32 = arith.constant 0 : i32
    %c0_i32_0 = arith.constant 0 : i32
    %c0_i32_1 = arith.constant 0 : i32
    return %arg0, %c0_i32, %c0_i32_0 : i32, i32, i32
  }
}

</mosaic_0001>

<llo_original>
// kernel: tpu_custom_call.1
$region0: #{tpu_custom_call.1}
  #allocation0 [shape = 'u32[]', space=smem, size = 0x4, offset = 0x4, fixed_abs, tag = 'smem constant byte address 0x4 - core index']
  #allocation1 [shape = 'u32[72,128]{1,0:T(1,128)}', space=vmem, size = 0x9000, scoped, tag = 'internal scratch']
  #allocation2 [shape = 'f32[8,128]{1,0:T(8,128)}', space=vmem, size = 0x1000, scoped, tag = 'scratch operand']
  #allocation3 [shape = 'f32[2,8,128]{2,1,0:T(8,128)}', space=vmem, size = 0x2000, scoped, tag = 'scratch operand']
  %s0 = inlined_call_operand.vmem [shape: f32[8,256], index: 0, kind: input, shape index: {}]
  %s1 = inlined_call_operand.hbm [shape: f32[8,256], index: 1, kind: input, shape index: {}]
  %s2 = inlined_call_operand.hbm [shape: f32[2,4,256], index: 2, kind: input, shape index: {}]
  %s3 = inlined_call_operand.hbm [shape: f32[2,4,256], index: 3, kind: input, shape index: {}]
  %s4 = inlined_call_operand.vmem [shape: f32[8,4], index: 4, kind: input, shape index: {}]
  %s5 = inlined_call_operand.vmem [shape: f32[8,1], index: 5, kind: input, shape index: {}]
  %s6 = inlined_call_operand.hbm [shape: f32[1,8,128], index: 6, kind: output, shape index: {}]
  %s7 = sld [smem:[#allocation0]]
  $region81: #{tpu_custom_call.1} parent=0
    _
  %s9 = ssub.s32 1, %s7
  %s10 = scalar_select 0, %s9, %s7
  $region1: #{tpu_custom_call.1} parent=0
    #allocation4 [shape = 'u8[8192]{0}', space=vmem, size = 0x2000, scoped, tag = 'input window, operand 1']
    #allocation5 [shape = 's32[2]{0}', space=sflag, size = 0x8, scoped, tag = 'scoped memory for tpu_custom_call.1']
    #allocation6 [shape = 's32[2]{0}', space=sflag, size = 0x8, scoped, tag = 'scoped memory for tpu_custom_call.1']
    #allocation7 [shape = 'u8[8192]{0}', space=vmem, size = 0x2000, scoped, tag = 'input window, operand 2']
    #allocation8 [shape = 's32[2]{0}', space=sflag, size = 0x8, scoped, tag = 'scoped memory for tpu_custom_call.1']
    #allocation9 [shape = 'u8[8192]{0}', space=vmem, size = 0x2000, scoped, tag = 'input window, operand 3']
    #allocation10 [shape = 'u8[4096]{0}', space=vmem, size = 0x1000, scoped, tag = 'output window, operand 0, single buffered']
    %11 = vsyncpa [#allocation5], 0
    %s12 = scalar_lea.sflag [#allocation5], 1
    %13 = vsyncpa %s12, 0
    %14 = vsyncpa [#allocation8], 0
    %s15 = scalar_lea.sflag [#allocation8], 1
    %16 = vsyncpa %s15, 0
    %17 = vsyncpa [#allocation6], 0
    loop: start=0, step=1, limit=4
    $region2: #{tpu_custom_call.1} parent=1 // loop_pre_header
      _
    $region3: #{tpu_custom_call.1} parent=1 // loop_header
      %s19 = sphi 0, %s23
      %p20 = scmp.ge.s32.totalorder %s19, 4
      %s26 = sphi 0, %s38
      %s27 = sphi 0, %s34
      %s28 = sphi 0, %s26
      %s29 = sphi 0, %s27
      %s30 = sphi 0, %s28
      %s31 = sphi 0, %s29
      %s49 = sphi 0, %s51
      %s52 = sphi 0, %s49
      %s53 = sphi 0, %s52
      %s69 = sphi 0, %s53
      %s83 = sphi 0, %s85
      %s86 = sphi 0, %s83
      %s87 = sphi 0, %s86
      %s103 = sphi 0, %s87
      %s117 = sphi 0, %s119
      %s120 = sphi 0, %s117
      %s121 = sphi 0, %s120
      %s137 = sphi 0, %s121
      %s151 = sphi 0, %s153
      %s154 = sphi 0, %s151
      %s155 = sphi 0, %s154
      %s171 = sphi 0, %s155
      %s175 = sphi 0, %s175
      %s177 = sphi 0, %s175
      %s178 = sphi 0, %s177
      %s192 = sphi 0, %s178
      %s196 = sphi 0, %s196
      %s198 = sphi 0, %s196
      %s199 = sphi 0, %s198
      %s213 = sphi 0, %s199
      %s219 = sphi 0, %s221
      %s222 = sphi 0, %s219
      %s223 = sphi 0, %s222
      %s239 = sphi 0, %s223
    $region4: #{tpu_custom_call.1} parent=1 // loop_header_branch
      %22 = sbr.rel (%p20) target = $region8
    $region5: #{tpu_custom_call.1} parent=1 // loop_body
      %s24 = ssub.s32 %s19, 1
      %s25 = ssub.s32 %s19, 2
      %s32 = sadd.s32 1, %s27
      %p33 = scmp.ge.s32.totalorder %s32, 2
      %s34 = scalar_select %p33, 0, %s32
      %s35 = sadd.s32 1, %s26
      %s36 = scalar_select %p33, %s35, %s26
      %p37 = scmp.ge.s32.totalorder %s36, 1
      %s38 = scalar_select %p37, 0, %s36
      %s39 = smul.u32 %s26, 2
      %s40 = sadd.s32 %s39, %s27
      %p41 = scmp.lt.s32.totalorder %s40, 1
      %s42 = scalar_select %p41, %s40, 1
      %s43 = smul.u32 %s38, 2
      %s44 = sadd.s32 %s43, %s34
      %p45 = scmp.lt.s32.totalorder %s44, 1
      %s46 = scalar_select %p45, %s44, 1
      %s47 = ssub.s32 %s42, %s46
      %p48 = scmp.eq.s32.totalorder %s47, 0
      %s50 = sadd.s32 %s49, 1
      %s51 = scalar_select %p48, %s49, %s50
      %p54 = pneg %p48
      %p55 = scmp.eq.s32.totalorder %s19, 1
      %p56 = por %p54, %p55
      %p57 = scmp.ne.s32.totalorder %s49, %s52
      %p58 = scmp.eq.s32.totalorder %s19, 0
      %p59 = por %p57, %p58
      %p60 = scmp.ne.s32.totalorder %s49, %s52
      %p61 = scmp.eq.s32.totalorder %s24, 1
      %p62 = por %p60, %p61
      %p63 = scmp.ne.s32.totalorder %s52, %s53
      %p64 = scmp.eq.s32.totalorder %s24, 0
      %p65 = por %p63, %p64
      %p66 = scmp.ne.s32.totalorder %s52, %s53
      %p67 = scmp.eq.s32.totalorder %s25, 1
      %p68 = por %p66, %p67
      %p70 = scmp.ne.s32.totalorder %s53, %s69
      %p71 = scmp.eq.s32.totalorder %s25, 0
      %p72 = por %p70, %p71
      %s73 = smul.u32 %s26, 2
      %s74 = sadd.s32 %s73, %s27
      %p75 = scmp.lt.s32.totalorder %s74, 1
      %s76 = scalar_select %p75, %s74, 1
      %s77 = smul.u32 %s38, 2
      %s78 = sadd.s32 %s77, %s34
      %p79 = scmp.lt.s32.totalorder %s78, 1
      %s80 = scalar_select %p79, %s78, 1
      %s81 = ssub.s32 %s76, %s80
      %p82 = scmp.eq.s32.totalorder %s81, 0
      %s84 = sadd.s32 %s83, 1
      %s85 = scalar_select %p82, %s83, %s84
      %p88 = pneg %p82
      %p89 = scmp.eq.s32.totalorder %s19, 1
      %p90 = por %p88, %p89
      %p91 = scmp.ne.s32.totalorder %s83, %s86
      %p92 = scmp.eq.s32.totalorder %s19, 0
      %p93 = por %p91, %p92
      %p94 = scmp.ne.s32.totalorder %s83, %s86
      %p95 = scmp.eq.s32.totalorder %s24, 1
      %p96 = por %p94, %p95
      %p97 = scmp.ne.s32.totalorder %s86, %s87
      %p98 = scmp.eq.s32.totalorder %s24, 0
      %p99 = por %p97, %p98
      %p100 = scmp.ne.s32.totalorder %s86, %s87
      %p101 = scmp.eq.s32.totalorder %s25, 1
      %p102 = por %p100, %p101
      %p104 = scmp.ne.s32.totalorder %s87, %s103
      %p105 = scmp.eq.s32.totalorder %s25, 0
      %p106 = por %p104, %p105
      %s107 = smul.u32 %s26, 2
      %s108 = sadd.s32 %s107, %s27
      %p109 = scmp.lt.s32.totalorder %s108, 1
      %s110 = scalar_select %p109, %s108, 1
      %s111 = smul.u32 %s38, 2
      %s112 = sadd.s32 %s111, %s34
      %p113 = scmp.lt.s32.totalorder %s112, 1
      %s114 = scalar_select %p113, %s112, 1
      %s115 = ssub.s32 %s110, %s114
      %p116 = scmp.eq.s32.totalorder %s115, 0
      %s118 = sadd.s32 %s117, 1
      %s119 = scalar_select %p116, %s117, %s118
      %p122 = pneg %p116
      %p123 = scmp.eq.s32.totalorder %s19, 1
      %p124 = por %p122, %p123
      %p125 = scmp.ne.s32.totalorder %s117, %s120
      %p126 = scmp.eq.s32.totalorder %s19, 0
      %p127 = por %p125, %p126
      %p128 = scmp.ne.s32.totalorder %s117, %s120
      %p129 = scmp.eq.s32.totalorder %s24, 1
      %p130 = por %p128, %p129
      %p131 = scmp.ne.s32.totalorder %s120, %s121
      %p132 = scmp.eq.s32.totalorder %s24, 0
      %p133 = por %p131, %p132
      %p134 = scmp.ne.s32.totalorder %s120, %s121
      %p135 = scmp.eq.s32.totalorder %s25, 1
      %p136 = por %p134, %p135
      %p138 = scmp.ne.s32.totalorder %s121, %s137
      %p139 = scmp.eq.s32.totalorder %s25, 0
      %p140 = por %p138, %p139
      %s141 = smul.u32 %s26, 2
      %s142 = sadd.s32 %s141, %s27
      %p143 = scmp.lt.s32.totalorder %s142, 1
      %s144 = scalar_select %p143, %s142, 1
      %s145 = smul.u32 %s38, 2
      %s146 = sadd.s32 %s145, %s34
      %p147 = scmp.lt.s32.totalorder %s146, 1
      %s148 = scalar_select %p147, %s146, 1
      %s149 = ssub.s32 %s144, %s148
      %p150 = scmp.eq.s32.totalorder %s149, 0
      %s152 = sadd.s32 %s151, 1
      %s153 = scalar_select %p150, %s151, %s152
      %p156 = pneg %p150
      %p157 = scmp.eq.s32.totalorder %s19, 1
      %p158 = por %p156, %p157
      %p159 = scmp.ne.s32.totalorder %s151, %s154
      %p160 = scmp.eq.s32.totalorder %s19, 0
      %p161 = por %p159, %p160
      %p162 = scmp.ne.s32.totalorder %s151, %s154
      %p163 = scmp.eq.s32.totalorder %s24, 1
      %p164 = por %p162, %p163
      %p165 = scmp.ne.s32.totalorder %s154, %s155
      %p166 = scmp.eq.s32.totalorder %s24, 0
      %p167 = por %p165, %p166
      %p168 = scmp.ne.s32.totalorder %s154, %s155
      %p169 = scmp.eq.s32.totalorder %s25, 1
      %p170 = por %p168, %p169
      %p172 = scmp.ne.s32.totalorder %s155, %s171
      %p173 = scmp.eq.s32.totalorder %s25, 0
      %p174 = por %p172, %p173
      %s176 = sadd.s32 %s175, 1
      %p179 = scmp.eq.s32.totalorder %s19, 1
      %p180 = scmp.ne.s32.totalorder %s175, %s177
      %p181 = scmp.eq.s32.totalorder %s19, 0
      %p182 = por %p180, %p181
      %p183 = scmp.ne.s32.totalorder %s175, %s177
      %p184 = scmp.eq.s32.totalorder %s24, 1
      %p185 = por %p183, %p184
      %p186 = scmp.ne.s32.totalorder %s177, %s178
      %p187 = scmp.eq.s32.totalorder %s24, 0
      %p188 = por %p186, %p187
      %p189 = scmp.ne.s32.totalorder %s177, %s178
      %p190 = scmp.eq.s32.totalorder %s25, 1
      %p191 = por %p189, %p190
      %p193 = scmp.ne.s32.totalorder %s178, %s192
      %p194 = scmp.eq.s32.totalorder %s25, 0
      %p195 = por %p193, %p194
      %s197 = sadd.s32 %s196, 1
      %p200 = scmp.eq.s32.totalorder %s19, 1
      %p201 = scmp.ne.s32.totalorder %s196, %s198
      %p202 = scmp.eq.s32.totalorder %s19, 0
      %p203 = por %p201, %p202
      %p204 = scmp.ne.s32.totalorder %s196, %s198
      %p205 = scmp.eq.s32.totalorder %s24, 1
      %p206 = por %p204, %p205
      %p207 = scmp.ne.s32.totalorder %s198, %s199
      %p208 = scmp.eq.s32.totalorder %s24, 0
      %p209 = por %p207, %p208
      %p210 = scmp.ne.s32.totalorder %s198, %s199
      %p211 = scmp.eq.s32.totalorder %s25, 1
      %p212 = por %p210, %p211
      %p214 = scmp.ne.s32.totalorder %s199, %s213
      %p215 = scmp.eq.s32.totalorder %s25, 0
      %p216 = por %p214, %p215
      %s217 = ssub.s32 %s26, %s38
      %p218 = scmp.eq.s32.totalorder %s217, 0
      %s220 = sadd.s32 %s219, 1
      %s221 = scalar_select %p218, %s219, %s220
      %p224 = pneg %p218
      %p225 = scmp.eq.s32.totalorder %s19, 1
      %p226 = por %p224, %p225
      %p227 = scmp.ne.s32.totalorder %s219, %s222
      %p228 = scmp.eq.s32.totalorder %s19, 0
      %p229 = por %p227, %p228
      %p230 = scmp.ne.s32.totalorder %s219, %s222
      %p231 = scmp.eq.s32.totalorder %s24, 1
      %p232 = por %p230, %p231
      %p233 = scmp.ne.s32.totalorder %s222, %s223
      %p234 = scmp.eq.s32.totalorder %s24, 0
      %p235 = por %p233, %p234
      %p236 = scmp.ne.s32.totalorder %s222, %s223
      %p237 = scmp.eq.s32.totalorder %s25, 1
      %p238 = por %p236, %p237
      %p240 = scmp.ne.s32.totalorder %s223, %s239
      %p241 = scmp.eq.s32.totalorder %s25, 0
      %p242 = por %p240, %p241
      %p243 = scmp.le.s32.totalorder 1, %s19
      %p244 = scmp.lt.s32.totalorder %s19, 3
      %p245 = pnand %p243, %p244
      %p246 = pneg %p245
      // Predicated region
      $region9: #{tpu_custom_call.1} parent=5 // pred_check
        _
      $region10: #{tpu_custom_call.1} parent=5 // pred_check_branch
        %248 = sbr.rel (%p245) target = $region12
      $region11: #{tpu_custom_call.1} parent=5 // pred_region
        %s249 = ssub.s32 %s19, 1
        // Predicated region
        $region13: #{tpu_custom_call.1} parent=11 // pred_check
          %p250 = pneg %p188
        $region14: #{tpu_custom_call.1} parent=11 // pred_check_branch
          %252 = sbr.rel (%p250) target = $region16
        $region15: #{tpu_custom_call.1} parent=11 // pred_region
          _
        $region16: #{tpu_custom_call.1} parent=11 // pred_fallthru
          _
        // Predicated region
        $region17: #{tpu_custom_call.1} parent=11 // pred_check
          %p253 = pneg %p209
        $region18: #{tpu_custom_call.1} parent=11 // pred_check_branch
          %255 = sbr.rel (%p253) target = $region20
        $region19: #{tpu_custom_call.1} parent=11 // pred_region
          _
        $region20: #{tpu_custom_call.1} parent=11 // pred_fallthru
          _
      $region12: #{tpu_custom_call.1} parent=5 // pred_fallthru
        _
      %p256 = scmp.lt.s32.totalorder %s19, 2
      // Predicated region
      $region21: #{tpu_custom_call.1} parent=5 // pred_check
        %p257 = pneg %p256
      $region22: #{tpu_custom_call.1} parent=5 // pred_check_branch
        %259 = sbr.rel (%p257) target = $region24
      $region23: #{tpu_custom_call.1} parent=5 // pred_region
        // Predicated region
        $region25: #{tpu_custom_call.1} parent=23 // pred_check
          %p260 = pneg %p59
        $region26: #{tpu_custom_call.1} parent=23 // pred_check_branch
          %262 = sbr.rel (%p260) target = $region28
        $region27: #{tpu_custom_call.1} parent=23 // pred_region
          %s263 = smul.u32 %s26, 2
          %s264 = sadd.s32 %s263, %s27
          %p265 = scmp.lt.s32.totalorder %s264, 1
          %s266 = scalar_select %p265, %s264, 1
          %p267 = scmp.lt.s32.totalorder %s266, 1
          %s268 = scalar_select %p267, %s266, 1
          %s269 = smul.addr %s268, 8
          %s270 = scalar_lea.vmem %s0, %s269
          %s271 = smul.u32 %s26, 2
          %s272 = sadd.s32 %s271, %s27
          %p273 = scmp.lt.s32.totalorder %s272, 1
          %s274 = scalar_select %p273, %s272, 1
        $region28: #{tpu_custom_call.1} parent=23 // pred_fallthru
          _
        // Predicated region
        $region29: #{tpu_custom_call.1} parent=23 // pred_check
          %p275 = pneg %p93
        $region30: #{tpu_custom_call.1} parent=23 // pred_check_branch
          %277 = sbr.rel (%p275) target = $region32
        $region31: #{tpu_custom_call.1} parent=23 // pred_region
          %s278 = sand.u32 %s83, 1
          %s279 = scalar_lea.sflag [#allocation5], %s278
          %s280 = sand.u32 %s83, 1
          %s281 = smul.addr %s280, 8
          %s282 = scalar_lea.vmem [#allocation4], %s281
          %s283 = smul.u32 %s26, 2
          %s284 = sadd.s32 %s283, %s27
          %p285 = scmp.lt.s32.totalorder %s284, 1
          %s286 = scalar_select %p285, %s284, 1
          %288 = vsyncadd %s279, 0
          %s289 = smul.addr %s286, 8
          %s290 = scalar_lea.hbm %s1, %s289
          %s292 = sshll.u32 %s290, 4
          %s293 = int_to_ptr.hbm [resolvable:$true] %s292
          %s294 = sshll.u32 %s282, 4
          %s295 = int_to_ptr.vmem [resolvable:$true] %s294
          %297 = dma.hbm_to_vmem [thread:$0]  %s293, 128, %s295, %s279
        $region32: #{tpu_custom_call.1} parent=23 // pred_fallthru
          _
        // Predicated region
        $region33: #{tpu_custom_call.1} parent=23 // pred_check
          %p298 = pneg %p127
        $region34: #{tpu_custom_call.1} parent=23 // pred_check_branch
          %300 = sbr.rel (%p298) target = $region36
        $region35: #{tpu_custom_call.1} parent=23 // pred_region
          %s301 = sand.u32 %s19, 1
          %s302 = scalar_lea.sflag [#allocation8], %s301
          %s303 = sand.u32 %s117, 1
          %s304 = smul.addr %s303, 8
          %s305 = scalar_lea.vmem [#allocation7], %s304
          %s306 = smul.u32 %s26, 2
          %s307 = sadd.s32 %s306, %s27
          %p308 = scmp.lt.s32.totalorder %s307, 1
          %s309 = scalar_select %p308, %s307, 1
          %311 = vsyncadd %s302, 0
          %s312 = smul.addr %s309, 4
          %s313 = scalar_lea.hbm %s2, %s312
          %s314 = sshll.u32 %s313, 4
          %s315 = int_to_ptr.hbm [resolvable:$true] %s314
          %s316 = sshll.u32 %s305, 4
          %s317 = int_to_ptr.vmem [resolvable:$true] %s316
          %322 = dma.hbm_to_vmem [thread:$0]  %s315, 128, %s317, %s302, 128, 64, 4
        $region36: #{tpu_custom_call.1} parent=23 // pred_fallthru
          _
        // Predicated region
        $region37: #{tpu_custom_call.1} parent=23 // pred_check
          %p323 = pneg %p161
        $region38: #{tpu_custom_call.1} parent=23 // pred_check_branch
          %325 = sbr.rel (%p323) target = $region40
        $region39: #{tpu_custom_call.1} parent=23 // pred_region
          %s326 = sand.u32 %s19, 1
          %s327 = scalar_lea.sflag [#allocation8], %s326
          %s328 = sand.u32 %s151, 1
          %s329 = smul.addr %s328, 8
          %s330 = scalar_lea.vmem [#allocation9], %s329
          %s331 = smul.u32 %s26, 2
          %s332 = sadd.s32 %s331, %s27
          %p333 = scmp.lt.s32.totalorder %s332, 1
          %s334 = scalar_select %p333, %s332, 1
          %336 = vsyncadd %s327, 0
          %s337 = smul.addr %s334, 4
          %s338 = scalar_lea.hbm %s3, %s337
          %s339 = sshll.u32 %s338, 4
          %s340 = int_to_ptr.hbm [resolvable:$true] %s339
          %s341 = sshll.u32 %s330, 4
          %s342 = int_to_ptr.vmem [resolvable:$true] %s341
          %347 = dma.hbm_to_vmem [thread:$0]  %s340, 128, %s342, %s327, 128, 64, 4
        $region40: #{tpu_custom_call.1} parent=23 // pred_fallthru
          _
      $region24: #{tpu_custom_call.1} parent=5 // pred_fallthru
        _
      %p348 = scmp.le.s32.totalorder 1, %s19
      %p349 = scmp.lt.s32.totalorder %s19, 3
      %p350 = pnand %p348, %p349
      %p351 = pneg %p350
      // Predicated region
      $region41: #{tpu_custom_call.1} parent=5 // pred_check
        _
      $region42: #{tpu_custom_call.1} parent=5 // pred_check_branch
        %353 = sbr.rel (%p350) target = $region44
      $region43: #{tpu_custom_call.1} parent=5 // pred_region
        %s354 = ssub.s32 %s19, 1
        %s355 = sand.u32 %s86, 1
        %s356 = scalar_lea.sflag [#allocation5], %s355
        %s357 = sand.u32 %s86, 1
        %s358 = smul.addr %s357, 8
        %s359 = scalar_lea.vmem [#allocation4], %s358
        // Predicated region
        $region45: #{tpu_custom_call.1} parent=43 // pred_check
          %p360 = pneg %p99
        $region46: #{tpu_custom_call.1} parent=43 // pred_check_branch
          %362 = sbr.rel (%p360) target = $region48
        $region47: #{tpu_custom_call.1} parent=43 // pred_region
          %364 = dma.done %s356, 128
        $region48: #{tpu_custom_call.1} parent=43 // pred_fallthru
          _
        %s365 = sand.u32 %s24, 1
        %s366 = scalar_lea.sflag [#allocation8], %s365
        %s367 = sand.u32 %s120, 1
        %s368 = smul.addr %s367, 8
        %s369 = scalar_lea.vmem [#allocation7], %s368
        // Predicated region
        $region49: #{tpu_custom_call.1} parent=43 // pred_check
          %p370 = pneg %p133
        $region50: #{tpu_custom_call.1} parent=43 // pred_check_branch
          %372 = sbr.rel (%p370) target = $region52
        $region51: #{tpu_custom_call.1} parent=43 // pred_region
          %374 = dma.done %s366, 128
        $region52: #{tpu_custom_call.1} parent=43 // pred_fallthru
          _
        %s375 = sand.u32 %s24, 1
        %s376 = scalar_lea.sflag [#allocation8], %s375
        %s377 = sand.u32 %s154, 1
        %s378 = smul.addr %s377, 8
        %s379 = scalar_lea.vmem [#allocation9], %s378
        // Predicated region
        $region53: #{tpu_custom_call.1} parent=43 // pred_check
          %p380 = pneg %p167
        $region54: #{tpu_custom_call.1} parent=43 // pred_check_branch
          %382 = sbr.rel (%p380) target = $region56
        $region55: #{tpu_custom_call.1} parent=43 // pred_region
          %384 = dma.done %s376, 128
        $region56: #{tpu_custom_call.1} parent=43 // pred_fallthru
          _
        %s385 = smul.u32 %s28, 2
        %s386 = sadd.s32 %s385, %s29
        %p387 = scmp.lt.s32.totalorder %s386, 1
        %s388 = scalar_select %p387, %s386, 1
        %p389 = scmp.lt.s32.totalorder %s388, 1
        %s390 = scalar_select %p389, %s388, 1
        %s391 = smul.addr %s390, 8
        %s392 = scalar_lea.vmem %s0, %s391
        %p393 = pneg %p65
        %p394 = pneg %p62
        %s395 = sand.u32 %s86, 1
        %s396 = scalar_lea.sflag [#allocation5], %s395
        %s397 = sand.u32 %s86, 1
        %s398 = smul.addr %s397, 8
        %s399 = scalar_lea.vmem [#allocation4], %s398
        %p400 = pneg %p99
        %p401 = pneg %p96
        %s402 = sand.u32 %s24, 1
        %s403 = scalar_lea.sflag [#allocation8], %s402
        %s404 = sand.u32 %s120, 1
        %s405 = smul.addr %s404, 8
        %s406 = scalar_lea.vmem [#allocation7], %s405
        %p407 = pneg %p133
        %p408 = pneg %p130
        %s409 = sand.u32 %s24, 1
        %s410 = scalar_lea.sflag [#allocation8], %s409
        %s411 = sand.u32 %s154, 1
        %s412 = smul.addr %s411, 8
        %s413 = scalar_lea.vmem [#allocation9], %s412
        %p414 = pneg %p167
        %p415 = pneg %p164
        %p416 = pneg %p188
        %p417 = pneg %p185
        %p418 = pneg %p209
        %p419 = pneg %p206
        %p420 = pneg %p235
        %p421 = pneg %p232
        %s422 = smul.u32 %s28, 2
        %s423 = sadd.s32 %s422, %s29
        %p424 = scmp.lt.s32.totalorder %s423, 1
        %s425 = scalar_select %p424, %s423, 1
        %p426 = scmp.lt.s32.totalorder %s425, 1
        %s427 = scalar_select %p426, %s425, 1
        %s428 = smul.addr %s427, 8
        %s429 = scalar_lea.vmem %s0, %s428
        %s430 = smul.u32 %s28, 2
        %s431 = sadd.s32 %s430, %s29
        %p432 = scmp.lt.s32.totalorder %s431, 1
        %s433 = scalar_select %p432, %s431, 1
        %s434 = smul.u32 %s28, 2
        %s435 = sadd.s32 %s434, %s29
        %p436 = scmp.lt.s32.totalorder %s435, 1
        %s437 = scalar_select %p436, %s435, 1
        %s438 = smul.u32 %s28, 2
        %s439 = sadd.s32 %s438, %s29
        %p440 = scmp.lt.s32.totalorder %s439, 1
        %s441 = scalar_select %p440, %s439, 1
        %s442 = smul.u32 %s28, 2
        %s443 = sadd.s32 %s442, %s29
        %p444 = scmp.lt.s32.totalorder %s443, 1
        %s445 = scalar_select %p444, %s443, 1
        %s446 = smul.u32 %s28, 2
        %s447 = sadd.s32 %s446, %s29
        %p448 = scmp.eq.s32.totalorder %s29, 0
        // Predicated region
        $region57: #{tpu_custom_call.1} parent=43 // pred_check
          %p449 = pneg %p448
        $region58: #{tpu_custom_call.1} parent=43 // pred_check_branch
          %451 = sbr.rel (%p449) target = $region60
        $region59: #{tpu_custom_call.1} parent=43 // pred_region
          %452 = vst [vmem:[#allocation2] sm:$0xff] 0.0
          %453 = vst [vmem:[#allocation3] sm:$0xff] 0.0
          %454 = vst [vmem:[#allocation3 + $0x8] sm:$0xff] 0.0
        $region60: #{tpu_custom_call.1} parent=43 // pred_fallthru
          _
        %p455 = scmp.lt.s32.totalorder %s447, 2
        // Predicated region
        $region61: #{tpu_custom_call.1} parent=43 // pred_check
          %p456 = pneg %p455
        $region62: #{tpu_custom_call.1} parent=43 // pred_check_branch
          %458 = sbr.rel (%p456) target = $region64
        $region63: #{tpu_custom_call.1} parent=43 // pred_region
          %v459 = vld [vmem:[%s429] sm:$0xff]
          %v460 = vld [vmem:[%s359] sm:$0xff]
          %v461 = vsub.f32 %v459, %v460
          %v462 = vld [vmem:[#allocation2] sm:$0xff]
          %v463 = vand.u32 2147483647, %v461
          %v464 = vadd.f32 %v462, %v463
          %465 = vst [vmem:[#allocation2] sm:$0xff] %v464
          %v466 = vld [vmem:[%s4] sm:$0xff]
          %v467 = vld [vmem:[%s5] sm:$0xff]
          %v468 = vld [vmem:[%s369] sm:$0xf]
          %v469 = vld [vmem:[%s379] sm:$0xf]
          %471 = vset.pattern.permute.xlu0 0
          %472 = vperm.xlu0 %471, %v467
          %v473 = vpop.permute.xlu0 %472
          %vm475 = vcmask 31744
          %v477 = vsel %vm475, %v466, 0
          %vm479 = vcmask 1043456
          %v481 = vsel %vm479, %v468, 0
          %483 = vmatpush.msra.mxu0 0.0
          %484 = vmatpush.msra.mxu0 0.0
          %485 = vmatpush.msra.mxu0 0.0
          %486 = vmatpush.msra.mxu0 0.0
          %487 = vmatpush.msra.mxu0 0.0
          %488 = vmatpush.msra.mxu0 0.0
          %489 = vmatpush.msra.mxu0 0.0
          %490 = vmatpush.msra.mxu0 0.0
          %491 = vmatpush.msra.mxu0 0.0
          %492 = vmatpush.msra.mxu0 0.0
          %493 = vmatpush.msra.mxu0 0.0
          %494 = vmatpush.msra.mxu0 0.0
          %495 = vmatpush.msra.mxu0 0.0
          %496 = vmatpush.msra.mxu0 0.0
          %497 = vmatpush.msra.mxu0 0.0
          %498 = vmatpush.msra.mxu0 %v481
          %499 = vmatmul.f32.gmra.mxu0 %v477
          %v500 = vpop.f32.mrf.mxu0
          %v501 = vadd.f32 %v473, %v500
          %502 = vdwg.mxu0
          %v503 = vmax.f32 %v501, 0.0
          %v505 = vsel %vm479, %v469, 0
          %507 = vmatpush.msra.mxu0 0.0
          %508 = vmatpush.msra.mxu0 0.0
          %509 = vmatpush.msra.mxu0 0.0
          %510 = vmatpush.msra.mxu0 0.0
          %511 = vmatpush.msra.mxu0 0.0
          %512 = vmatpush.msra.mxu0 0.0
          %513 = vmatpush.msra.mxu0 0.0
          %514 = vmatpush.msra.mxu0 0.0
          %515 = vmatpush.msra.mxu0 0.0
          %516 = vmatpush.msra.mxu0 0.0
          %517 = vmatpush.msra.mxu0 0.0
          %518 = vmatpush.msra.mxu0 0.0
          %519 = vmatpush.msra.mxu0 0.0
          %520 = vmatpush.msra.mxu0 0.0
          %521 = vmatpush.msra.mxu0 0.0
          %522 = vmatpush.msra.mxu0 %v505
          %523 = vmatmul.f32.gmra.mxu0 %v477
          %v524 = vpop.f32.mrf.mxu0
          %v525 = vadd.f32 %v473, %v524
          %526 = vdwg.mxu0
          %v527 = vmax.f32 %v525, 0.0
          %v528 = vsub.f32 %v503, %v527
          %v529 = vld [vmem:[#allocation3] sm:$0xff]
          %v530 = vmul.f32 %v528, %v528
          %v531 = vadd.f32 %v529, %v530
          %532 = vst [vmem:[#allocation3] sm:$0xff] %v531
          %s533 = scalar_lea.vmem %s369, 4 [#allocation7]
          %v534 = vld [vmem:[%s533] sm:$0xf]
          %s535 = scalar_lea.vmem %s379, 4 [#allocation9]
          %v536 = vld [vmem:[%s535] sm:$0xf]
          %v538 = vsel %vm479, %v534, 0
          %540 = vmatpush.msra.mxu0 0.0
          %541 = vmatpush.msra.mxu0 0.0
          %542 = vmatpush.msra.mxu0 0.0
          %543 = vmatpush.msra.mxu0 0.0
          %544 = vmatpush.msra.mxu0 0.0
          %545 = vmatpush.msra.mxu0 0.0
          %546 = vmatpush.msra.mxu0 0.0
          %547 = vmatpush.msra.mxu0 0.0
          %548 = vmatpush.msra.mxu0 0.0
          %549 = vmatpush.msra.mxu0 0.0
          %550 = vmatpush.msra.mxu0 0.0
          %551 = vmatpush.msra.mxu0 0.0
          %552 = vmatpush.msra.mxu0 0.0
          %553 = vmatpush.msra.mxu0 0.0
          %554 = vmatpush.msra.mxu0 0.0
          %555 = vmatpush.msra.mxu0 %v538
          %556 = vmatmul.f32.gmra.mxu0 %v477
          %v557 = vpop.f32.mrf.mxu0
          %v558 = vadd.f32 %v473, %v557
          %559 = vdwg.mxu0
          %v560 = vmax.f32 %v558, 0.0
          %v562 = vsel %vm479, %v536, 0
          %564 = vmatpush.msra.mxu0 0.0
          %565 = vmatpush.msra.mxu0 0.0
          %566 = vmatpush.msra.mxu0 0.0
          %567 = vmatpush.msra.mxu0 0.0
          %568 = vmatpush.msra.mxu0 0.0
          %569 = vmatpush.msra.mxu0 0.0
          %570 = vmatpush.msra.mxu0 0.0
          %571 = vmatpush.msra.mxu0 0.0
          %572 = vmatpush.msra.mxu0 0.0
          %573 = vmatpush.msra.mxu0 0.0
          %574 = vmatpush.msra.mxu0 0.0
          %575 = vmatpush.msra.mxu0 0.0
          %576 = vmatpush.msra.mxu0 0.0
          %577 = vmatpush.msra.mxu0 0.0
          %578 = vmatpush.msra.mxu0 0.0
          %579 = vmatpush.msra.mxu0 %v562
          %580 = vmatmul.f32.gmra.mxu0 %v477
          %v581 = vpop.f32.mrf.mxu0
          %v582 = vadd.f32 %v473, %v581
          %583 = vdwg.mxu0
          %v584 = vmax.f32 %v582, 0.0
          %v585 = vsub.f32 %v560, %v584
          %s586 = scalar_lea.vmem [#allocation3], 8
          %v587 = vld [vmem:[%s586] sm:$0xff]
          %v588 = vmul.f32 %v585, %v585
          %v589 = vadd.f32 %v587, %v588
          %590 = vst [vmem:[%s586] sm:$0xff] %v589
        $region64: #{tpu_custom_call.1} parent=43 // pred_fallthru
          _
        %p591 = scmp.eq.s32.totalorder %s29, 1
        // Predicated region
        $region65: #{tpu_custom_call.1} parent=43 // pred_check
          %p592 = pneg %p591
        $region66: #{tpu_custom_call.1} parent=43 // pred_check_branch
          %594 = sbr.rel (%p592) target = $region68
        $region67: #{tpu_custom_call.1} parent=43 // pred_region
          %v595 = vld [vmem:[#allocation2] sm:$0xff]
          %596 = vadd.xlane.f32.xlu0 %v595
          %v597 = vpop.xlane.xlu0 %596
          %v598 = vrot.slane %v597, 4
          %v599 = vadd.f32 %v597, %v598
          %v600 = vrot.slane %v599, 2
          %v601 = vadd.f32 %v599, %v600
          %v602 = vrot.slane %v601, 1
          %v603 = vadd.f32 %v601, %v602
          %s604 = vtos %v603
          %v605 = vld [vmem:[#allocation3] sm:$0xff]
          %v606 = vld [vmem:[#allocation3 + $0x8] sm:$0xff]
          %v607 = vadd.f32 %v605, %v606
          %608 = vadd.xlane.f32.xlu0 %v607
          %v609 = vpop.xlane.xlu0 %608
          %v610 = vrot.slane %v609, 4
          %v611 = vadd.f32 %v609, %v610
          %v612 = vrot.slane %v611, 2
          %v613 = vadd.f32 %v611, %v612
          %v614 = vrot.slane %v613, 1
          %v615 = vadd.f32 %v613, %v614
          %s616 = vtos %v615
          %v617 = vlaneseq
          %v618 = vshrl.u32 %v617, 7
          %vm619 = vcmp.eq.s32.totalorder %v618, 0
          %vm620 = vcmp.eq.s32.totalorder %v618, 1
          %v621 = vstv %s616
          %v622 = vsel %vm620, %v621, 0.0
          %v623 = vstv %s604
          %v624 = vsel %vm619, %v623, %v622
          %625 = vst [vmem:[#allocation10] sm:$0xff] %v624
        $region68: #{tpu_custom_call.1} parent=43 // pred_fallthru
          _
        // Predicated region
        $region69: #{tpu_custom_call.1} parent=43 // pred_check
          %p626 = pneg %p232
        $region70: #{tpu_custom_call.1} parent=43 // pred_check_branch
          %628 = sbr.rel (%p626) target = $region72
        $region71: #{tpu_custom_call.1} parent=43 // pred_region
          %630 = vsyncadd [#allocation6], 0
          %s631 = smul.addr %s28, 8
          %s632 = scalar_lea.hbm %s6, %s631
          %s634 = sshll.u32 [#allocation10], 4
          %s635 = int_to_ptr.vmem [resolvable:$true] %s634
          %s636 = sshll.u32 %s632, 4
          %s637 = int_to_ptr.hbm [resolvable:$true] %s636
          %639 = dma.vmem_to_hbm [thread:$0]  %s635, 128, %s637, [#allocation6]
        $region72: #{tpu_custom_call.1} parent=43 // pred_fallthru
          _
        // Predicated region
        $region73: #{tpu_custom_call.1} parent=43 // pred_check
          %p640 = pneg %p232
        $region74: #{tpu_custom_call.1} parent=43 // pred_check_branch
          %642 = sbr.rel (%p640) target = $region76
        $region75: #{tpu_custom_call.1} parent=43 // pred_region
          %644 = dma.done [#allocation6], 128
        $region76: #{tpu_custom_call.1} parent=43 // pred_fallthru
          _
      $region44: #{tpu_custom_call.1} parent=5 // pred_fallthru
        _
      %p645 = scmp.le.s32.totalorder 2, %s19
      // Predicated region
      $region77: #{tpu_custom_call.1} parent=5 // pred_check
        %p646 = pneg %p645
      $region78: #{tpu_custom_call.1} parent=5 // pred_check_branch
        %648 = sbr.rel (%p646) target = $region80
      $region79: #{tpu_custom_call.1} parent=5 // pred_region
        %s649 = ssub.s32 %s19, 2
      $region80: #{tpu_custom_call.1} parent=5 // pred_fallthru
        _
    $region6: #{tpu_custom_call.1} parent=1 // loop_footer
      %s23 = sadd.s32 1, %s19
    $region7: #{tpu_custom_call.1} parent=1 // loop_footer_branch
      %18 = sbr.rel target = $region3
    $region8: #{tpu_custom_call.1} parent=1 // loop_exit
      _
    %650 = vsyncpa [#allocation5], 1
    %s651 = scalar_lea.sflag [#allocation5], 1
    %652 = vsyncpa %s651, 1
    %653 = vsyncpa [#allocation8], 1
    %s654 = scalar_lea.sflag [#allocation8], 1
    %655 = vsyncpa %s654, 1
    %656 = vsyncpa [#allocation6], 1
    %s657 = scalar_lea.sflag [#allocation6], 1
    %658 = vsyncpa %s657, 1

</llo_original>
